<compile_context>
chip_gen: v5e
topology: v5e:2x2
jax: 0.10.0
libtpu: 0.0.40
codegen_flags: <defaults>
</compile_context>

<pallas_src>
import jax
import jax.numpy as jnp
from jax import lax
from jax.experimental import pallas as pl
from jax.experimental.pallas import tpu as pltpu


def _linear_logsoftmax_kernel(x_ref, w_ref, b_ref, o_ref):
    # x_ref: (TILE_N, d_in)  w_ref: (d_out, d_in)  b_ref: (1, d_out)  o_ref: (TILE_N, d_out)
    x = x_ref[...]
    w = w_ref[...]
    b = b_ref[...].astype(jnp.float32)

    # y = x @ W^T + b ; MXU matmul with f32 accumulation, operands in native dtype.
    y = lax.dot_general(
        x, w,
        dimension_numbers=(((1,), (1,)), ((), ())),
        preferred_element_type=jnp.float32,
    ) + b

    # Numerically stable log_softmax along dim=1 (lane axis), in f32.
    m = jnp.max(y, axis=-1, keepdims=True)
    shifted = y - m
    lse = jnp.log(jnp.sum(jnp.exp(shifted), axis=-1, keepdims=True))
    o_ref[...] = (shifted - lse).astype(o_ref.dtype)


def node_finetuning_layer_forward(graph_embedding, graph_len, weight, bias,
                                  *, tile_n_cap=512):
    """graph_embedding: (N, input_dim); weight: (output_dim, input_dim); bias: (output_dim,).

    graph_len is unused (matches the PyTorch forward). Returns (N, output_dim) log-probs.
    """
    del graph_len  # unused in the reference forward
    n, d_in = graph_embedding.shape
    d_out, d_in_w = weight.shape
    assert d_in_w == d_in, "weight must be (output_dim, input_dim)"

    # Row tiling: pad N up to a multiple of the tile (tile itself a multiple of 8
    # sublanes). Padded rows are zeros -> harmless per-row softmax, sliced off below.
    n_pad8 = ((n + 7) // 8) * 8
    tile_n = min(tile_n_cap, n_pad8)
    n_padded = pl.cdiv(n_pad8, tile_n) * tile_n
    x = graph_embedding
    if n_padded != n:
        x = jnp.pad(x, ((0, n_padded - n), (0, 0)))

    bias2d = bias.reshape(1, d_out)  # tiny; keeps a simple 2-D VMEM block

    out = pl.pallas_call(
        _linear_logsoftmax_kernel,
        out_shape=jax.ShapeDtypeStruct((n_padded, d_out), graph_embedding.dtype),
        grid=(n_padded // tile_n,),
        in_specs=[
            pl.BlockSpec((tile_n, d_in), lambda i: (i, 0)),   # x rows follow the grid
            pl.BlockSpec((d_out, d_in), lambda i: (0, 0)),    # weight resident
            pl.BlockSpec((1, d_out), lambda i: (0, 0)),       # bias resident
        ],
        out_specs=pl.BlockSpec((tile_n, d_out), lambda i: (i, 0)),
        compiler_params=pltpu.CompilerParams(
            dimension_semantics=("parallel",),
        ),
    )(x, weight, bias2d)

    return out[:n] if n_padded != n else out


if __name__ == "__main__":
    # Small shapes consistent with the module: N nodes, input_dim -> output_dim.
    N, INPUT_DIM, OUTPUT_DIM = 8, 32, 16

    key = jax.random.PRNGKey(0)
    kx, kw, kb = jax.random.split(key, 3)

    # Deterministic init mimicking nn.Linear's default U(-1/sqrt(fan_in), 1/sqrt(fan_in)).
    bound = 1.0 / (INPUT_DIM ** 0.5)
    weight = jax.random.uniform(kw, (OUTPUT_DIM, INPUT_DIM),
                                minval=-bound, maxval=bound, dtype=jnp.float32)
    bias = jax.random.uniform(kb, (OUTPUT_DIM,),
                              minval=-bound, maxval=bound, dtype=jnp.float32)

    graph_embedding = jax.random.normal(kx, (N, INPUT_DIM), dtype=jnp.float32)
    graph_len = jnp.full((N,), 5, dtype=jnp.int32)  # unused in forward

    out = node_finetuning_layer_forward(graph_embedding, graph_len, weight, bias)
    out = jax.block_until_ready(out)

    # Sanity check against a pure-JAX reference.
    y_ref = graph_embedding @ weight.T + bias
    ref = jax.nn.log_softmax(y_ref, axis=1)
    assert out.shape == (N, OUTPUT_DIM)
    assert jnp.allclose(out, ref, atol=1e-5, rtol=1e-5)

    print("KERNEL_OK")
</pallas_src>

<mosaic_0001>
module attributes {stable_mosaic.version = 11 : i64} {
  func.func @_linear_logsoftmax_kernel(%arg0: i32, %arg1: memref<8x32xf32, #tpu.memory_space<vmem>>, %arg2: memref<16x32xf32, #tpu.memory_space<vmem>>, %arg3: memref<1x16xf32, #tpu.memory_space<vmem>>, %arg4: memref<8x16xf32, #tpu.memory_space<vmem>>) attributes {dimension_semantics = [#tpu.dimension_semantics<parallel>], iteration_bounds = array<i64: 1>, scalar_prefetch = 0 : i64, scratch_operands = 0 : i64, tpu.core_type = #tpu.core_type<tc>, window_params = [{transform_indices = @transform_0, window_bounds = array<i64: 8, 32>}, {pipeline_mode = #tpu.pipeline_mode<synchronous>, transform_indices = @transform_1, window_bounds = array<i64: 16, 32>}, {pipeline_mode = #tpu.pipeline_mode<synchronous>, transform_indices = @transform_2, window_bounds = array<i64: 1, 16>}, {transform_indices = @transform_3, window_bounds = array<i64: 8, 16>}]} {
    %c0 = arith.constant 0 : index
    %c0_0 = arith.constant 0 : index
    %0 = vector.load %arg1[%c0, %c0_0] : memref<8x32xf32, #tpu.memory_space<vmem>>, vector<8x32xf32>
    %c0_1 = arith.constant 0 : index
    %c0_2 = arith.constant 0 : index
    %1 = vector.load %arg2[%c0_1, %c0_2] : memref<16x32xf32, #tpu.memory_space<vmem>>, vector<16x32xf32>
    %c0_3 = arith.constant 0 : index
    %c0_4 = arith.constant 0 : index
    %2 = vector.load %arg3[%c0_3, %c0_4] : memref<1x16xf32, #tpu.memory_space<vmem>>, vector<1x16xf32>
    %cst = arith.constant dense<0.000000e+00> : vector<8x16xf32>
    %3 = tpu.matmul %0, %1, %cst {dimension_numbers = #tpu.dot_dimension_numbers<[1], [1], [0], [0], [0, 0, 1, 0], [], []>} : vector<8x32xf32>, vector<16x32xf32>, vector<8x16xf32> -> vector<8x16xf32>
    %4 = vector.broadcast %2 : vector<1x16xf32> to vector<8x16xf32>
    %5 = arith.addf %3, %4 : vector<8x16xf32>
    %cst_5 = arith.constant dense<0xFF800000> : vector<8xf32>
    %6 = vector.multi_reduction <maximumf>, %5, %cst_5 [1] : vector<8x16xf32> to vector<8xf32>
    %7 = vector.shape_cast %6 : vector<8xf32> to vector<8x1xf32>
    %8 = vector.broadcast %7 : vector<8x1xf32> to vector<8x16xf32>
    %9 = arith.subf %5, %8 : vector<8x16xf32>
    %10 = math.exp %9 : vector<8x16xf32>
    %cst_6 = arith.constant dense<0.000000e+00> : vector<8xf32>
    %11 = vector.multi_reduction <add>, %10, %cst_6 [1] : vector<8x16xf32> to vector<8xf32>
    %12 = vector.shape_cast %11 : vector<8xf32> to vector<8x1xf32>
    %13 = math.log %12 : vector<8x1xf32>
    %14 = vector.broadcast %13 : vector<8x1xf32> to vector<8x16xf32>
    %15 = arith.subf %9, %14 : vector<8x16xf32>
    %c0_7 = arith.constant 0 : index
    %c0_8 = arith.constant 0 : index
    %16 = vector.load %arg4[%c0_7, %c0_8] : memref<8x16xf32, #tpu.memory_space<vmem>>, vector<8x16xf32>
    tpu.vector_store %arg4[%c0_7, %c0_8], %15 {strides = array<i32>} : memref<8x16xf32, #tpu.memory_space<vmem>>, vector<8x16xf32>,
    return
  }
  func.func @transform_0(%arg0: i32) -> (i32, i32) {
    %c0_i32 = arith.constant 0 : i32
    %c0_i32_0 = arith.constant 0 : i32
    return %arg0, %c0_i32 : i32, i32
  }
  func.func @transform_1(%arg0: i32) -> (i32, i32) {
    %c0_i32 = arith.constant 0 : i32
    %c0_i32_0 = arith.constant 0 : i32
    %c0_i32_1 = arith.constant 0 : i32
    return %c0_i32, %c0_i32_0 : i32, i32
  }
  func.func @transform_2(%arg0: i32) -> (i32, i32) {
    %c0_i32 = arith.constant 0 : i32
    %c0_i32_0 = arith.constant 0 : i32
    %c0_i32_1 = arith.constant 0 : i32
    return %c0_i32, %c0_i32_0 : i32, i32
  }
  func.func @transform_3(%arg0: i32) -> (i32, i32) {
    %c0_i32 = arith.constant 0 : i32
    %c0_i32_0 = arith.constant 0 : i32
    return %arg0, %c0_i32 : i32, i32
  }
}

</mosaic_0001>

<llo_original>
// kernel: tpu_custom_call.1
$region0: #{tpu_custom_call.1}
  #allocation0 [shape = 'u32[]', space=smem, size = 0x4, offset = 0x4, fixed_abs, tag = 'smem constant byte address 0x4 - core index']
  #allocation1 [shape = 'u32[72,128]{1,0:T(1,128)}', space=vmem, size = 0x9000, scoped, tag = 'internal scratch']
  %s0 = inlined_call_operand.hbm [shape: f32[8,32], index: 0, kind: input, shape index: {}]
  %s1 = inlined_call_operand.hbm [shape: f32[16,32], index: 1, kind: input, shape index: {}]
  %s2 = inlined_call_operand.vmem [shape: f32[1,16], index: 2, kind: input, shape index: {}]
  %s3 = inlined_call_operand.hbm [shape: f32[8,16], index: 3, kind: output, shape index: {}]
  %s4 = sld [smem:[#allocation0]]
  $region30: #{tpu_custom_call.1} parent=0
    _
  %s6 = ssub.s32 1, %s4
  %s7 = scalar_select 0, %s6, %s4
  $region1: #{tpu_custom_call.1} parent=0
    #allocation2 [shape = 'u8[4096]{0}', space=vmem, size = 0x1000, scoped, tag = 'input window, operand 0, single buffered']
    #allocation3 [shape = 's32[1]{0}', space=sflag, size = 0x4, scoped, tag = 'scoped memory for tpu_custom_call.1']
    #allocation4 [shape = 's32[1]{0}', space=sflag, size = 0x4, scoped, tag = 'scoped memory for tpu_custom_call.1']
    #allocation5 [shape = 'u8[8192]{0}', space=vmem, size = 0x2000, scoped, tag = 'input window, operand 1, single buffered']
    #allocation6 [shape = 's32[1]{0}', space=sflag, size = 0x4, scoped, tag = 'scoped memory for tpu_custom_call.1']
    #allocation7 [shape = 'u8[4096]{0}', space=vmem, size = 0x1000, scoped, tag = 'output window, operand 0, single buffered']
    %8 = vsyncpa [#allocation3], 0
    %9 = vsyncpa [#allocation6], 0
    %10 = vsyncpa [#allocation4], 0
    // Predicated region
    $region2: #{tpu_custom_call.1} parent=1 // pred_check
      _
    $region3: #{tpu_custom_call.1} parent=1 // pred_check_branch
      %12 = sbr.rel (0) target = $region5
    $region4: #{tpu_custom_call.1} parent=1 // pred_region
      %14 = vsyncadd [#allocation3], 0
      %s16 = sshll.u32 %s0, 4
      %s17 = int_to_ptr.hbm [resolvable:$true] %s16
      %s18 = sshll.u32 [#allocation2], 4
      %s19 = int_to_ptr.vmem [resolvable:$true] %s18
      %21 = dma.hbm_to_vmem [thread:$0]  %s17, 128, %s19, [#allocation3]
    $region5: #{tpu_custom_call.1} parent=1 // pred_fallthru
      _
    // Predicated region
    $region6: #{tpu_custom_call.1} parent=1 // pred_check
      _
    $region7: #{tpu_custom_call.1} parent=1 // pred_check_branch
      %23 = sbr.rel (0) target = $region9
    $region8: #{tpu_custom_call.1} parent=1 // pred_region
      %25 = vsyncadd [#allocation6], 0
      %s26 = sshll.u32 %s1, 4
      %s27 = int_to_ptr.hbm [resolvable:$true] %s26
      %s28 = sshll.u32 [#allocation5], 4
      %s29 = int_to_ptr.vmem [resolvable:$true] %s28
      %34 = dma.hbm_to_vmem [thread:$0]  %s27, 256, %s29, [#allocation6], 128, 128, 8
    $region9: #{tpu_custom_call.1} parent=1 // pred_fallthru
      _
    // Predicated region
    $region10: #{tpu_custom_call.1} parent=1 // pred_check
      _
    $region11: #{tpu_custom_call.1} parent=1 // pred_check_branch
      %36 = sbr.rel (0) target = $region13
    $region12: #{tpu_custom_call.1} parent=1 // pred_region
      _
    $region13: #{tpu_custom_call.1} parent=1 // pred_fallthru
      _
    // Predicated region
    $region14: #{tpu_custom_call.1} parent=1 // pred_check
      _
    $region15: #{tpu_custom_call.1} parent=1 // pred_check_branch
      %38 = sbr.rel (0) target = $region17
    $region16: #{tpu_custom_call.1} parent=1 // pred_region
      %40 = dma.done [#allocation3], 128
    $region17: #{tpu_custom_call.1} parent=1 // pred_fallthru
      _
    // Predicated region
    $region18: #{tpu_custom_call.1} parent=1 // pred_check
      _
    $region19: #{tpu_custom_call.1} parent=1 // pred_check_branch
      %42 = sbr.rel (0) target = $region21
    $region20: #{tpu_custom_call.1} parent=1 // pred_region
      %44 = dma.done [#allocation6], 256
    $region21: #{tpu_custom_call.1} parent=1 // pred_fallthru
      _
    %v45 = vld [vmem:[#allocation2] sm:$0xff]
    %v46 = vld [vmem:[#allocation5] sm:$0xff]
    %v47 = vld [vmem:[#allocation5 + $0x8] sm:$0xff]
    %v48 = vld [vmem:[%s2] sm:$0x1]
    %v50 = vperm.slane %v48, 0
    %vm52 = vcmask 261120
    %v54 = vsel %vm52, %v45, 0
    %v57 = vsel %vm52, %v46, 0
    %v60 = vsel %vm52, %v47, 0
    %62 = vmatpush.xpose.msra.mxu0 0.0
    %63 = vmatpush.xpose.msra.mxu0 0.0
    %64 = vmatpush.xpose.msra.mxu0 0.0
    %65 = vmatpush.xpose.msra.mxu0 0.0
    %66 = vmatpush.xpose.msra.mxu0 0.0
    %67 = vmatpush.xpose.msra.mxu0 0.0
    %68 = vmatpush.xpose.msra.mxu0 0.0
    %69 = vmatpush.xpose.msra.mxu0 0.0
    %70 = vmatpush.xpose.msra.mxu0 0.0
    %71 = vmatpush.xpose.msra.mxu0 0.0
    %72 = vmatpush.xpose.msra.mxu0 0.0
    %73 = vmatpush.xpose.msra.mxu0 0.0
    %74 = vmatpush.xpose.msra.mxu0 0.0
    %75 = vmatpush.xpose.msra.mxu0 0.0
    %76 = vmatpush.xpose.msra.mxu0 %v60
    %77 = vmatpush.xpose.msra.mxu0 %v57
    %78 = vmatmul.f32.gmra.mxu0 %v54
    %v79 = vpop.f32.mrf.mxu0
    %v80 = vadd.f32 %v50, %v79
    %81 = vdwg.mxu0
    %vm82 = vcmask 130048
    %v83 = vsel %vm82, %v80, -inf
    %84 = vmax.xlane.f32.xlu0 %v83
    %v85 = vpop.xlane.xlu0 %84
    %v86 = vsub.f32 %v80, %v85
    %v87 = vmul.f32 %v86, 1.442695
    %v88 = vpow.pop %v87
    %v89 = vsel %vm82, %v88, 0.0
    %90 = vadd.xlane.f32.xlu0 %v89
    %v91 = vpop.xlane.xlu0 %90
    %v92 = vlog2.pop %v91
    %v93 = vmul.f32 %v92, 0.6931472
    %v94 = vsub.f32 %v86, %v93
    %95 = vst.msk [vmem:[#allocation7] sm:$0xff] %vm82, %v94
    // Predicated region
    $region22: #{tpu_custom_call.1} parent=1 // pred_check
      _
    $region23: #{tpu_custom_call.1} parent=1 // pred_check_branch
      %97 = sbr.rel (0) target = $region25
    $region24: #{tpu_custom_call.1} parent=1 // pred_region
      %99 = vsyncadd [#allocation4], 0
      %s101 = sshll.u32 [#allocation7], 4
      %s102 = int_to_ptr.vmem [resolvable:$true] %s101
      %s103 = sshll.u32 %s3, 4
      %s104 = int_to_ptr.hbm [resolvable:$true] %s103
      %106 = dma.vmem_to_hbm [thread:$0]  %s102, 128, %s104, [#allocation4]
    $region25: #{tpu_custom_call.1} parent=1 // pred_fallthru
      _
    // Predicated region
    $region26: #{tpu_custom_call.1} parent=1 // pred_check
      _
    $region27: #{tpu_custom_call.1} parent=1 // pred_check_branch
      %108 = sbr.rel (0) target = $region29
    $region28: #{tpu_custom_call.1} parent=1 // pred_region
      %110 = dma.done [#allocation4], 128
    $region29: #{tpu_custom_call.1} parent=1 // pred_fallthru
      _
    %111 = vsyncpa [#allocation3], 1
    %112 = vsyncpa [#allocation6], 1
    %113 = vsyncpa [#allocation4], 1

</llo_original>
